<compile_context>
chip_gen: v7x
topology: tpu7x:2x2x1
jax: 0.10.0
libtpu: 0.0.40
codegen_flags: <defaults>
</compile_context>

<pallas_src>
import jax
import jax.numpy as jnp
from jax.experimental import pallas as pl
from jax.experimental.pallas import tpu as pltpu


def _add_kernel(x1_ref, x2_ref, o_ref):
    # Pure elementwise add on the VPU over the whole VMEM tile.
    o_ref[...] = x1_ref[...] + x2_ref[...]


def pallas_add(x1: jax.Array, x2: jax.Array, *,
               max_block_bytes: int = 2 << 20) -> jax.Array:
    """Elementwise x1 + x2 for arbitrary (matching) shapes via Pallas."""
    assert x1.shape == x2.shape and x1.dtype == x2.dtype
    orig_shape = x1.shape
    n = int(x1.size)
    itemsize = jnp.dtype(x1.dtype).itemsize

    # Flatten to a lane-dense 2-D view (R, C): widest width that divides n,
    # falling back to a single row if nothing divides.
    C = next((c for c in (2048, 1024, 512, 256, 128) if n % c == 0), n)
    R = n // C
    a = x1.reshape(R, C)
    b = x2.reshape(R, C)

    # Sublane alignment for the dtype (f32: 8, bf16: 16, int8/fp8: 32).
    sub_align = max(8, 32 // itemsize)

    # Column tile: full width if one row fits the budget, else a 128-multiple.
    if C * itemsize <= max_block_bytes:
        tc = C
    else:
        tc = max(128, (max_block_bytes // itemsize // 128) * 128)

    # Row tile: biggest sub_align multiple whose block fits the budget
    # (or the full row extent if the whole array fits in one block).
    tr_cap = max(1, max_block_bytes // (tc * itemsize))
    if tr_cap >= R:
        tr = R
    else:
        tr = max(sub_align, (tr_cap // sub_align) * sub_align)

    grid = (pl.cdiv(R, tr), pl.cdiv(C, tc))

    out2d = pl.pallas_call(
        _add_kernel,
        out_shape=jax.ShapeDtypeStruct((R, C), x1.dtype),
        grid=grid,
        in_specs=[
            pl.BlockSpec((tr, tc), lambda i, j: (i, j)),
            pl.BlockSpec((tr, tc), lambda i, j: (i, j)),
        ],
        out_specs=pl.BlockSpec((tr, tc), lambda i, j: (i, j)),
        compiler_params=pltpu.CompilerParams(
            dimension_semantics=("parallel", "parallel")),
    )(a, b)

    return out2d.reshape(orig_shape)


if __name__ == "__main__":
    key = jax.random.PRNGKey(0)
    k1, k2, k3, k4 = jax.random.split(key, 4)

    # Case 1: small 4-D tensor (batch=2, channels=4, 16x16 spatial), as a
    # generic elementwise add would see from the PyTorch module.
    x1 = jax.random.normal(k1, (2, 4, 16, 16), dtype=jnp.float32)
    x2 = jax.random.normal(k2, (2, 4, 16, 16), dtype=jnp.float32)
    y = pallas_add(x1, x2)
    jax.block_until_ready(y)
    assert jnp.allclose(y, x1 + x2, atol=1e-6), "mismatch vs reference add (4-D)"

    # Case 2: small 2-D tensor exercising the lane-dense flatten path.
    a = jax.random.normal(k3, (64, 256), dtype=jnp.float32)
    b = jax.random.normal(k4, (64, 256), dtype=jnp.float32)
    z = pallas_add(a, b)
    jax.block_until_ready(z)
    assert jnp.allclose(z, a + b, atol=1e-6), "mismatch vs reference add (2-D)"

    print("KERNEL_OK")
</pallas_src>

<mosaic_0001>
module attributes {stable_mosaic.version = 11 : i64} {
  func.func @_add_kernel(%arg0: i32, %arg1: i32, %arg2: memref<1x2048xf32, #tpu.memory_space<vmem>>, %arg3: memref<1x2048xf32, #tpu.memory_space<vmem>>, %arg4: memref<1x2048xf32, #tpu.memory_space<vmem>>) attributes {dimension_semantics = [#tpu.dimension_semantics<parallel>, #tpu.dimension_semantics<parallel>], iteration_bounds = array<i64: 1, 1>, scalar_prefetch = 0 : i64, scratch_operands = 0 : i64, tpu.core_type = #tpu.core_type<tc>, window_params = [{transform_indices = @transform_0, window_bounds = array<i64: 1, 2048>}, {transform_indices = @transform_1, window_bounds = array<i64: 1, 2048>}, {transform_indices = @transform_2, window_bounds = array<i64: 1, 2048>}]} {
    %c0 = arith.constant 0 : index
    %c0_0 = arith.constant 0 : index
    %0 = vector.load %arg2[%c0, %c0_0] : memref<1x2048xf32, #tpu.memory_space<vmem>>, vector<1x2048xf32>
    %c0_1 = arith.constant 0 : index
    %c0_2 = arith.constant 0 : index
    %1 = vector.load %arg3[%c0_1, %c0_2] : memref<1x2048xf32, #tpu.memory_space<vmem>>, vector<1x2048xf32>
    %2 = arith.addf %0, %1 : vector<1x2048xf32>
    %c0_3 = arith.constant 0 : index
    %c0_4 = arith.constant 0 : index
    %3 = vector.load %arg4[%c0_3, %c0_4] : memref<1x2048xf32, #tpu.memory_space<vmem>>, vector<1x2048xf32>
    tpu.vector_store %arg4[%c0_3, %c0_4], %2 {strides = array<i32>} : memref<1x2048xf32, #tpu.memory_space<vmem>>, vector<1x2048xf32>,
    return
  }
  func.func @transform_0(%arg0: i32, %arg1: i32) -> (i32, i32) {
    %c0_i32 = arith.constant 0 : i32
    return %arg0, %arg1 : i32, i32
  }
  func.func @transform_1(%arg0: i32, %arg1: i32) -> (i32, i32) {
    %c0_i32 = arith.constant 0 : i32
    return %arg0, %arg1 : i32, i32
  }
  func.func @transform_2(%arg0: i32, %arg1: i32) -> (i32, i32) {
    %c0_i32 = arith.constant 0 : i32
    return %arg0, %arg1 : i32, i32
  }
}

</mosaic_0001>

<llo_original>
// kernel: tpu_custom_call.1
$region0: #{tpu_custom_call.1}
  #allocation0 [shape = 'u32[]', space=smem, size = 0x4, offset = 0x4, fixed_abs, tag = 'smem constant byte address 0x4 - core index']
  #allocation1 [shape = 'u32[144,128]{1,0:T(1,128)}', space=vmem, size = 0x12000, scoped, tag = 'internal scratch']
  %s0 = inlined_call_operand.hbm [shape: f32[1,2048], index: 0, kind: input, shape index: {}]
  %s1 = inlined_call_operand.hbm [shape: f32[1,2048], index: 1, kind: input, shape index: {}]
  %s2 = inlined_call_operand.hbm [shape: f32[1,2048], index: 2, kind: output, shape index: {}]
  %s3 = sld [smem:[#allocation0]]
  $region26: #{tpu_custom_call.1} parent=0
    _
  %s5 = ssub.s32 1, %s3
  %s6 = scalar_select 0, %s5, %s3
  $region1: #{tpu_custom_call.1} parent=0
    #allocation2 [shape = 'u8[8192]{0}', space=vmem, size = 0x2000, scoped, tag = 'input window, operand 0, single buffered']
    #allocation3 [shape = 's32[1]{0}', space=sflag, size = 0x4, scoped, tag = 'scoped memory for tpu_custom_call.1']
    #allocation4 [shape = 's32[1]{0}', space=sflag, size = 0x4, scoped, tag = 'scoped memory for tpu_custom_call.1']
    #allocation5 [shape = 'u8[8192]{0}', space=vmem, size = 0x2000, scoped, tag = 'input window, operand 1, single buffered']
    #allocation6 [shape = 's32[1]{0}', space=sflag, size = 0x4, scoped, tag = 'scoped memory for tpu_custom_call.1']
    #allocation7 [shape = 'u8[8192]{0}', space=vmem, size = 0x2000, scoped, tag = 'output window, operand 0, single buffered']
    %7 = vsyncpa [#allocation3], 0
    %8 = vsyncpa [#allocation6], 0
    %9 = vsyncpa [#allocation4], 0
    // Predicated region
    $region2: #{tpu_custom_call.1} parent=1 // pred_check
      _
    $region3: #{tpu_custom_call.1} parent=1 // pred_check_branch
      %11 = sbr.rel (0) target = $region5
    $region4: #{tpu_custom_call.1} parent=1 // pred_region
      %s13 = ssub.s32 256, 256
      %14 = vsyncadd [#allocation3], %s13
      %s16 = sshll.u32 [#allocation2], 4
      %s17 = int_to_ptr.vmem [resolvable:$true] %s16
      %19 = dma.hbm_to_vmem [thread:$0]  %s0, 256, %s17, [#allocation3]
    $region5: #{tpu_custom_call.1} parent=1 // pred_fallthru
      _
    // Predicated region
    $region6: #{tpu_custom_call.1} parent=1 // pred_check
      _
    $region7: #{tpu_custom_call.1} parent=1 // pred_check_branch
      %21 = sbr.rel (0) target = $region9
    $region8: #{tpu_custom_call.1} parent=1 // pred_region
      %s23 = ssub.s32 256, 256
      %24 = vsyncadd [#allocation6], %s23
      %s26 = sshll.u32 [#allocation5], 4
      %s27 = int_to_ptr.vmem [resolvable:$true] %s26
      %29 = dma.hbm_to_vmem [thread:$0]  %s1, 256, %s27, [#allocation6]
    $region9: #{tpu_custom_call.1} parent=1 // pred_fallthru
      _
    // Predicated region
    $region10: #{tpu_custom_call.1} parent=1 // pred_check
      _
    $region11: #{tpu_custom_call.1} parent=1 // pred_check_branch
      %31 = sbr.rel (0) target = $region13
    $region12: #{tpu_custom_call.1} parent=1 // pred_region
      %32 = dma.done [#allocation3], 256
    $region13: #{tpu_custom_call.1} parent=1 // pred_fallthru
      _
    // Predicated region
    $region14: #{tpu_custom_call.1} parent=1 // pred_check
      _
    $region15: #{tpu_custom_call.1} parent=1 // pred_check_branch
      %34 = sbr.rel (0) target = $region17
    $region16: #{tpu_custom_call.1} parent=1 // pred_region
      %35 = dma.done [#allocation6], 256
    $region17: #{tpu_custom_call.1} parent=1 // pred_fallthru
      _
    %v36 = vld [vmem:[#allocation2] sm:$0xff]
    %v37 = vld [vmem:[#allocation2 + $0x8] sm:$0xff]
    %v38 = vld [vmem:[#allocation5] sm:$0xff]
    %v39 = vld [vmem:[#allocation5 + $0x8] sm:$0xff]
    %v40 = vadd.f32 %v36, %v38
    %v41 = vadd.f32 %v37, %v39
    %42 = vst [vmem:[#allocation7] sm:$0xff] %v40
    %43 = vst [vmem:[#allocation7 + $0x8] sm:$0xff] %v41
    // Predicated region
    $region18: #{tpu_custom_call.1} parent=1 // pred_check
      _
    $region19: #{tpu_custom_call.1} parent=1 // pred_check_branch
      %45 = sbr.rel (0) target = $region21
    $region20: #{tpu_custom_call.1} parent=1 // pred_region
      %s47 = ssub.s32 256, 256
      %48 = vsyncadd [#allocation4], %s47
      %s50 = sshll.u32 [#allocation7], 4
      %s51 = int_to_ptr.vmem [resolvable:$true] %s50
      %53 = dma.vmem_to_hbm [thread:$0]  %s51, 256, %s2, [#allocation4]
    $region21: #{tpu_custom_call.1} parent=1 // pred_fallthru
      _
    // Predicated region
    $region22: #{tpu_custom_call.1} parent=1 // pred_check
      _
    $region23: #{tpu_custom_call.1} parent=1 // pred_check_branch
      %55 = sbr.rel (0) target = $region25
    $region24: #{tpu_custom_call.1} parent=1 // pred_region
      %56 = dma.done [#allocation4], 256
    $region25: #{tpu_custom_call.1} parent=1 // pred_fallthru
      _
    %57 = vsyncpa [#allocation3], 1
    %58 = vsyncpa [#allocation6], 1
    %59 = vsyncpa [#allocation4], 1

</llo_original>
